<compile_context>
chip_gen: v7x
topology: tpu7x:2x2x1
jax: 0.10.0
libtpu: 0.0.40
codegen_flags: <defaults>
</compile_context>

<pallas_src>
import functools

import jax
import jax.numpy as jnp
from jax.experimental import pallas as pl
from jax.experimental.pallas import tpu as pltpu

_LANE = 128
# Pad values for ragged tails: hinge = max(margin - (pos - neg), 0) == 0 for these.
_PAD_POS = 1e30
_PAD_NEG = -1e30


def _sublane_multiple(*dtypes):
    """Required sublane multiple for a non-full block: 8 (f32) / 16 (bf16) / 32 (8-bit)."""
    m = 8
    for dt in dtypes:
        m = max(m, 32 // max(1, jnp.dtype(dt).itemsize))
    return m


def _pick_block_rows(rows, mult, requested):
    if requested is None:
        requested = 1024                       # ~0.5 MiB f32 per input tile
    requested = max(mult, (int(requested) // mult) * mult)
    # A block equal to the full row extent is always layout-legal.
    return rows if requested >= rows else requested


def _pad_and_view(x_flat, width, pad_value):
    """(n,) -> (ceil(n/width), width). Free reshape when aligned; pads only the tail."""
    n = int(x_flat.shape[0])
    rows = -(-n // width)
    total = rows * width
    if total != n:
        # Only the ragged case copies; pad values keep the hinge at exactly 0.
        x_flat = jnp.pad(x_flat, (0, total - n), constant_values=pad_value)
    return jnp.reshape(x_flat, (rows, width)), rows


def _hinge_sum_kernel(pos_ref, neg_ref, out_ref, acc_ref, *,
                      margin, group_k, rows_valid, block_rows, steps_per_core):
    """Streaming hinge-sum.

    pos_ref: (block_rows, gw)    gw = 128 // group_k  (128 when group_k == 1)
    neg_ref: (block_rows, 128)   lane-dense flat negatives
    acc_ref: (block_rows, gw)    f32 running per-element partial sums (VMEM)
    out_ref: (8, gw)             per-core partial sums (only sublane 0 nonzero)
    """
    p = pl.program_id(0)                 # parallel (core) axis
    k = pl.program_id(1)                 # arbitrary (streaming) axis

    @pl.when(k == 0)
    def _():
        acc_ref[...] = jnp.zeros_like(acc_ref)

    pos = pos_ref[...].astype(jnp.float32)
    neg = neg_ref[...].astype(jnp.float32)

    if group_k == 1:
        neg_red = neg                                      # (block_rows, 128)
    else:
        gw = _LANE // group_k
        lane = jax.lax.broadcasted_iota(jnp.int32, (_LANE, gw), 0)
        grp = jax.lax.broadcasted_iota(jnp.int32, (_LANE, gw), 1)
        gmat = (lane // group_k == grp).astype(jnp.float32)   # (128, gw) 0/1
        # Per-positive mean over its group_k negatives rides the (idle) MXU slot.
        neg_red = jnp.dot(neg, gmat,
                          preferred_element_type=jnp.float32) * (1.0 / group_k)

    hinge = jnp.maximum(margin - (pos - neg_red), 0.0)     # (block_rows, gw)

    # Row-granular bounds handling (only the block covering the end of the array
    # — or a clamped out-of-range block from the core split — takes the masked
    # path; interior blocks pay zero masking cost).
    gstep = p * steps_per_core + k
    row_start = gstep * block_rows
    fully_valid = row_start + block_rows <= rows_valid

    @pl.when(fully_valid)
    def _():
        acc_ref[...] += hinge

    @pl.when(jnp.logical_not(fully_valid))
    def _():
        row = jax.lax.broadcasted_iota(jnp.int32, hinge.shape, 0) + row_start
        acc_ref[...] += jnp.where(row < rows_valid, hinge, 0.0)

    @pl.when(k == pl.num_programs(1) - 1)
    def _():
        total = jnp.sum(acc_ref[...], axis=0, keepdims=True)        # (1, gw)
        gw_out = total.shape[1]
        sub = jax.lax.broadcasted_iota(jnp.int32, (8, gw_out), 0)
        out_ref[...] = jnp.where(sub == 0,
                                 jnp.broadcast_to(total, (8, gw_out)), 0.0)


def _hinge_sum(pos2, neg2, *, rows, gw, margin, group_k, block_rows):
    """Returns sum_i max(0, margin - (pos_i - neg_i)) as an f32 scalar."""
    mult = _sublane_multiple(pos2.dtype, neg2.dtype)
    block_rows = _pick_block_rows(rows, mult, block_rows)
    nblocks = pl.cdiv(rows, block_rows)
    num_cores = 2 if nblocks >= 2 else 1            # v7x 2-TC split; no-op on 1-TC
    steps_per_core = pl.cdiv(nblocks, num_cores)
    last_block = nblocks - 1

    def in_map(p, k):
        # Clamp so blocks past the array (uneven core split) stay in bounds;
        # their contribution is masked to zero in-kernel via row indices.
        return (jnp.minimum(p * steps_per_core + k, last_block), 0)

    kernel = functools.partial(
        _hinge_sum_kernel, margin=float(margin), group_k=group_k,
        rows_valid=rows, block_rows=block_rows, steps_per_core=steps_per_core)

    partials = pl.pallas_call(
        kernel,
        out_shape=jax.ShapeDtypeStruct((num_cores * 8, gw), jnp.float32),
        grid=(num_cores, steps_per_core),
        in_specs=[
            pl.BlockSpec((block_rows, gw), in_map),
            pl.BlockSpec((block_rows, _LANE), in_map),
        ],
        out_specs=pl.BlockSpec((8, gw), lambda p, k: (p, 0)),
        scratch_shapes=[pltpu.VMEM((block_rows, gw), jnp.float32)],
        compiler_params=pltpu.CompilerParams(
            dimension_semantics=("parallel", "arbitrary")),
    )(pos2, neg2)
    # Tiny final reduce of the per-core lane partials (<= 2*8*128 f32).
    return jnp.sum(partials)


def margin_loss(pos_score, neg_score, *, margin=1.0, reduction="mean",
                block_rows=None):
    """JAX/Pallas equivalent of Margin_Loss.forward(pos_score, neg_score)."""
    if reduction not in ("mean", "sum"):
        # TODO(synk): reduction='none' (per-pair vector output) not implemented.
        raise NotImplementedError(f"reduction={reduction!r} not supported")

    pos = jnp.reshape(pos_score, (-1,))
    neg = jnp.reshape(neg_score, (-1,))
    n = int(pos.shape[0])
    m = int(neg.shape[0])

    group_k = 1
    if reduction == "sum" and m != n:
        if m % n != 0:
            raise ValueError(
                f"neg_score size ({m}) must be a multiple of pos_score size ({n})")
        k = m // n
        if _LANE % k == 0:
            group_k = k                                   # lane-dense grouped kernel
        else:
            # K does not divide the 128-lane width: do the per-positive mean with
            # one dense XLA reduction, then the Pallas hinge/sum pass on (n,) pairs.
            # TODO(synk): native Pallas kernel for K not dividing 128.
            neg = jnp.mean(jnp.reshape(neg, (n, k)).astype(jnp.float32), axis=1)
    elif m != n:
        raise ValueError(
            f"pos_score ({n}) and neg_score ({m}) sizes must match for "
            f"reduction={reduction!r}")

    gw = _LANE // group_k                                  # 128 when group_k == 1
    pos2, rows = _pad_and_view(pos, gw, _PAD_POS)
    neg2, rows_neg = _pad_and_view(neg, _LANE, _PAD_NEG)
    assert rows == rows_neg

    total = _hinge_sum(pos2, neg2, rows=rows, gw=gw, margin=margin,
                       group_k=group_k, block_rows=block_rows)
    if reduction == "mean":
        return total / n
    return total


if __name__ == "__main__":
    key = jax.random.PRNGKey(0)
    keys = jax.random.split(key, 10)
    margin = 1.0

    def ref_loss(pos, neg, reduction):
        pos = jnp.reshape(pos, (-1,)).astype(jnp.float32)
        if reduction == "sum":
            negm = jnp.mean(
                jnp.reshape(neg, (pos.shape[0], -1)).astype(jnp.float32), axis=1)
            return jnp.sum(jnp.maximum(margin - (pos - negm), 0.0))
        neg = jnp.reshape(neg, (-1,)).astype(jnp.float32)
        return jnp.mean(jnp.maximum(margin - (pos - neg), 0.0))

    checks = []

    # 1) reduction='mean', tiny ragged batch (single block).
    p1 = jax.random.normal(keys[0], (8,), dtype=jnp.float32)
    n1 = jax.random.normal(keys[1], (8,), dtype=jnp.float32)
    checks.append((margin_loss(p1, n1, margin=margin, reduction="mean"),
                   ref_loss(p1, n1, "mean")))

    # 2) reduction='sum', K=4 negatives per positive (lane-dense grouped kernel).
    p2 = jax.random.normal(keys[2], (8,), dtype=jnp.float32)
    n2 = jax.random.normal(keys[3], (8, 4), dtype=jnp.float32)
    checks.append((margin_loss(p2, n2, margin=margin, reduction="sum"),
                   ref_loss(p2, n2, "sum")))

    # 3) reduction='mean', ragged N=200.
    p3 = jax.random.normal(keys[4], (200,), dtype=jnp.float32)
    n3 = jax.random.normal(keys[5], (200,), dtype=jnp.float32)
    checks.append((margin_loss(p3, n3, margin=margin, reduction="mean"),
                   ref_loss(p3, n3, "mean")))

    # 4) aligned (no-pad) multi-block path + 2-way core split (small block_rows
    #    override purely to exercise the multi-block machinery at small sizes).
    p4 = jax.random.normal(keys[6], (4096,), dtype=jnp.float32)
    n4 = jax.random.normal(keys[7], (4096,), dtype=jnp.float32)
    checks.append((margin_loss(p4, n4, margin=margin, reduction="mean", block_rows=8),
                   ref_loss(p4, n4, "mean")))

    # 5) ragged multi-block path with a clamped out-of-range tail block.
    p5 = jax.random.normal(keys[8], (2600,), dtype=jnp.float32)
    n5 = jax.random.normal(keys[9], (2600,), dtype=jnp.float32)
    checks.append((margin_loss(p5, n5, margin=margin, reduction="sum", block_rows=8),
                   ref_loss(p5, n5, "sum")))

    # 6) reduction='sum', K=16, N=1000 (aligned grouped path, several blocks).
    p6 = jax.random.normal(keys[0], (1000,), dtype=jnp.float32)
    n6 = jax.random.normal(keys[1], (1000, 16), dtype=jnp.float32)
    checks.append((margin_loss(p6, n6, margin=margin, reduction="sum", block_rows=32),
                   ref_loss(p6, n6, "sum")))

    # 7) reduction='sum', K=3 (does not divide 128 -> XLA row-mean + Pallas pass).
    p7 = jax.random.normal(keys[2], (10,), dtype=jnp.float32)
    n7 = jax.random.normal(keys[3], (10, 3), dtype=jnp.float32)
    checks.append((margin_loss(p7, n7, margin=margin, reduction="sum"),
                   ref_loss(p7, n7, "sum")))

    # 8) bf16 inputs (dtype-aware block rounding / in-kernel cast).
    p8 = jax.random.normal(keys[4], (300,), dtype=jnp.bfloat16)
    n8 = jax.random.normal(keys[5], (300,), dtype=jnp.bfloat16)
    checks.append((margin_loss(p8, n8, margin=margin, reduction="mean"),
                   ref_loss(p8, n8, "mean")))

    jax.block_until_ready([c[0] for c in checks])

    for i, (got, want) in enumerate(checks):
        assert jnp.allclose(got, want, rtol=1e-5, atol=1e-4), (i, got, want)
    print("KERNEL_OK")
</pallas_src>

<mosaic_0001>
module attributes {stable_mosaic.version = 11 : i64} {
  func.func @_hinge_sum_kernel(%arg0: i32, %arg1: i32, %arg2: memref<1x128xf32, #tpu.memory_space<vmem>>, %arg3: memref<1x128xf32, #tpu.memory_space<vmem>>, %arg4: memref<8x128xf32, #tpu.memory_space<vmem>>, %arg5: memref<1x128xf32, #tpu.memory_space<vmem>>) attributes {dimension_semantics = [#tpu.dimension_semantics<parallel>, #tpu.dimension_semantics<arbitrary>], iteration_bounds = array<i64: 1, 1>, scalar_prefetch = 0 : i64, scratch_operands = 1 : i64, tpu.core_type = #tpu.core_type<tc>, window_params = [{transform_indices = @transform_0, window_bounds = array<i64: 1, 128>}, {transform_indices = @transform_1, window_bounds = array<i64: 1, 128>}, {transform_indices = @transform_2, window_bounds = array<i64: 8, 128>}]} {
    %c0_i32 = arith.constant 0 : i32
    %0 = arith.cmpi eq, %arg1, %c0_i32 : i32
    %1 = arith.extui %0 : i1 to i32
    %c0_i32_0 = arith.constant 0 : i32
    %2 = arith.cmpi ne, %1, %c0_i32_0 : i32
    scf.if %2 {
      %cst_12 = arith.constant 0.000000e+00 : f32
      %23 = vector.broadcast %cst_12 : f32 to vector<1x128xf32>
      %c0_13 = arith.constant 0 : index
      %c0_14 = arith.constant 0 : index
      %24 = vector.load %arg5[%c0_13, %c0_14] : memref<1x128xf32, #tpu.memory_space<vmem>>, vector<1x128xf32>
      tpu.vector_store %arg5[%c0_13, %c0_14], %23 {strides = array<i32>} : memref<1x128xf32, #tpu.memory_space<vmem>>, vector<1x128xf32>,
    } else {
    }
    %c0 = arith.constant 0 : index
    %c0_1 = arith.constant 0 : index
    %3 = vector.load %arg2[%c0, %c0_1] : memref<1x128xf32, #tpu.memory_space<vmem>>, vector<1x128xf32>
    %c0_2 = arith.constant 0 : index
    %c0_3 = arith.constant 0 : index
    %4 = vector.load %arg3[%c0_2, %c0_3] : memref<1x128xf32, #tpu.memory_space<vmem>>, vector<1x128xf32>
    %5 = arith.subf %3, %4 : vector<1x128xf32>
    %cst = arith.constant 1.000000e+00 : f32
    %6 = vector.broadcast %cst : f32 to vector<1x128xf32>
    %7 = arith.subf %6, %5 : vector<1x128xf32>
    %cst_4 = arith.constant 0.000000e+00 : f32
    %8 = vector.broadcast %cst_4 : f32 to vector<1x128xf32>
    %9 = arith.maximumf %7, %8 : vector<1x128xf32>
    %c1_i32 = arith.constant 1 : i32
    %10 = arith.muli %arg0, %c1_i32 : i32
    %11 = arith.addi %10, %arg1 : i32
    %c1_i32_5 = arith.constant 1 : i32
    %12 = arith.muli %11, %c1_i32_5 : i32
    %c1_i32_6 = arith.constant 1 : i32
    %13 = arith.addi %12, %c1_i32_6 : i32
    %c1_i32_7 = arith.constant 1 : i32
    %14 = arith.cmpi sle, %13, %c1_i32_7 : i32
    %15 = arith.extui %14 : i1 to i32
    %c0_i32_8 = arith.constant 0 : i32
    %16 = arith.cmpi ne, %15, %c0_i32_8 : i32
    scf.if %16 {
      %c0_12 = arith.constant 0 : index
      %c0_13 = arith.constant 0 : index
      %23 = vector.load %arg5[%c0_12, %c0_13] : memref<1x128xf32, #tpu.memory_space<vmem>>, vector<1x128xf32>
      %24 = arith.addf %23, %9 : vector<1x128xf32>
      %c0_14 = arith.constant 0 : index
      %c0_15 = arith.constant 0 : index
      %25 = vector.load %arg5[%c0_14, %c0_15] : memref<1x128xf32, #tpu.memory_space<vmem>>, vector<1x128xf32>
      tpu.vector_store %arg5[%c0_14, %c0_15], %24 {strides = array<i32>} : memref<1x128xf32, #tpu.memory_space<vmem>>, vector<1x128xf32>,
    } else {
    }
    %true = arith.constant true
    %17 = arith.xori %14, %true : i1
    %18 = arith.extui %17 : i1 to i32
    %c0_i32_9 = arith.constant 0 : i32
    %19 = arith.cmpi ne, %18, %c0_i32_9 : i32
    scf.if %19 {
      %23 = tpu.iota {dimensions = array<i32: 0>} : vector<1x128xi32>
      %24 = vector.broadcast %12 : i32 to vector<1x128xi32>
      %25 = arith.addi %23, %24 : vector<1x128xi32>
      %c0_12 = arith.constant 0 : index
      %c0_13 = arith.constant 0 : index
      %26 = vector.load %arg5[%c0_12, %c0_13] : memref<1x128xf32, #tpu.memory_space<vmem>>, vector<1x128xf32>
      %c1_i32_14 = arith.constant 1 : i32
      %27 = vector.broadcast %c1_i32_14 : i32 to vector<1x128xi32>
      %28 = arith.cmpi slt, %25, %27 : vector<1x128xi32>
      %cst_15 = arith.constant 0.000000e+00 : f32
      %29 = vector.broadcast %cst_15 : f32 to vector<1x128xf32>
      %30 = arith.select %28, %9, %29 : vector<1x128xi1>, vector<1x128xf32>
      %31 = arith.addf %26, %30 : vector<1x128xf32>
      %c0_16 = arith.constant 0 : index
      %c0_17 = arith.constant 0 : index
      %32 = vector.load %arg5[%c0_16, %c0_17] : memref<1x128xf32, #tpu.memory_space<vmem>>, vector<1x128xf32>
      tpu.vector_store %arg5[%c0_16, %c0_17], %31 {strides = array<i32>} : memref<1x128xf32, #tpu.memory_space<vmem>>, vector<1x128xf32>,
    } else {
    }
    %c0_i32_10 = arith.constant 0 : i32
    %20 = arith.cmpi eq, %arg1, %c0_i32_10 : i32
    %21 = arith.extui %20 : i1 to i32
    %c0_i32_11 = arith.constant 0 : i32
    %22 = arith.cmpi ne, %21, %c0_i32_11 : i32
    scf.if %22 {
      %c0_12 = arith.constant 0 : index
      %c0_13 = arith.constant 0 : index
      %23 = vector.load %arg5[%c0_12, %c0_13] : memref<1x128xf32, #tpu.memory_space<vmem>>, vector<1x128xf32>
      %cst_14 = arith.constant dense<0.000000e+00> : vector<128xf32>
      %24 = vector.multi_reduction <add>, %23, %cst_14 [0] : vector<1x128xf32> to vector<128xf32>
      %25 = vector.shape_cast %24 : vector<128xf32> to vector<1x128xf32>
      %26 = tpu.iota {dimensions = array<i32: 0>} : vector<8x128xi32>
      %c0_i32_15 = arith.constant 0 : i32
      %27 = vector.broadcast %c0_i32_15 : i32 to vector<8x128xi32>
      %28 = arith.cmpi eq, %26, %27 : vector<8x128xi32>
      %29 = vector.shape_cast %25 : vector<1x128xf32> to vector<1x128xf32>
      %30 = vector.broadcast %29 : vector<1x128xf32> to vector<8x128xf32>
      %cst_16 = arith.constant 0.000000e+00 : f32
      %31 = vector.broadcast %cst_16 : f32 to vector<8x128xf32>
      %32 = arith.select %28, %30, %31 : vector<8x128xi1>, vector<8x128xf32>
      %c0_17 = arith.constant 0 : index
      %c0_18 = arith.constant 0 : index
      %33 = vector.load %arg4[%c0_17, %c0_18] : memref<8x128xf32, #tpu.memory_space<vmem>>, vector<8x128xf32>
      tpu.vector_store %arg4[%c0_17, %c0_18], %32 {strides = array<i32>} : memref<8x128xf32, #tpu.memory_space<vmem>>, vector<8x128xf32>,
    } else {
    }
    return
  }
  func.func @transform_0(%arg0: i32, %arg1: i32) -> (i32, i32) {
    %c1_i32 = arith.constant 1 : i32
    %0 = arith.muli %arg0, %c1_i32 : i32
    %1 = arith.addi %0, %arg1 : i32
    %c0_i32 = arith.constant 0 : i32
    %2 = arith.minsi %1, %c0_i32 : i32
    %c0_i32_0 = arith.constant 0 : i32
    %c0_i32_1 = arith.constant 0 : i32
    return %2, %c0_i32_0 : i32, i32
  }
  func.func @transform_1(%arg0: i32, %arg1: i32) -> (i32, i32) {
    %c1_i32 = arith.constant 1 : i32
    %0 = arith.muli %arg0, %c1_i32 : i32
    %1 = arith.addi %0, %arg1 : i32
    %c0_i32 = arith.constant 0 : i32
    %2 = arith.minsi %1, %c0_i32 : i32
    %c0_i32_0 = arith.constant 0 : i32
    %c0_i32_1 = arith.constant 0 : i32
    return %2, %c0_i32_0 : i32, i32
  }
  func.func @transform_2(%arg0: i32, %arg1: i32) -> (i32, i32) {
    %c0_i32 = arith.constant 0 : i32
    %c0_i32_0 = arith.constant 0 : i32
    return %arg0, %c0_i32 : i32, i32
  }
}

</mosaic_0001>

<llo_original>
// kernel: tpu_custom_call.1
$region0: #{tpu_custom_call.1}
  #allocation0 [shape = 'u32[]', space=smem, size = 0x4, offset = 0x4, fixed_abs, tag = 'smem constant byte address 0x4 - core index']
  #allocation1 [shape = 'u32[144,128]{1,0:T(1,128)}', space=vmem, size = 0x12000, scoped, tag = 'internal scratch']
  #allocation2 [shape = 'f32[1,128]{1,0:T(1,128)}', space=vmem, size = 0x200, scoped, tag = 'scratch operand']
  %s0 = inlined_call_operand.hbm [shape: f32[1,128], index: 0, kind: input, shape index: {}]
  %s1 = inlined_call_operand.vmem [shape: f32[1,128], index: 1, kind: input, shape index: {}]
  %s2 = inlined_call_operand.hbm [shape: f32[8,128], index: 2, kind: output, shape index: {}]
  %s3 = sld [smem:[#allocation0]]
  $region38: #{tpu_custom_call.1} parent=0
    _
  %s5 = ssub.s32 1, %s3
  %s6 = scalar_select 0, %s5, %s3
  $region1: #{tpu_custom_call.1} parent=0
    #allocation3 [shape = 'u8[512]{0}', space=vmem, size = 0x400, scoped, tag = 'input window, operand 0, single buffered']
    #allocation4 [shape = 's32[1]{0}', space=sflag, size = 0x4, scoped, tag = 'scoped memory for tpu_custom_call.1']
    #allocation5 [shape = 's32[1]{0}', space=sflag, size = 0x4, scoped, tag = 'scoped memory for tpu_custom_call.1']
    #allocation6 [shape = 'u8[4096]{0}', space=vmem, size = 0x1000, scoped, tag = 'output window, operand 0, single buffered']
    %7 = vsyncpa [#allocation4], 0
    %8 = vsyncpa [#allocation5], 0
    // Predicated region
    $region2: #{tpu_custom_call.1} parent=1 // pred_check
      _
    $region3: #{tpu_custom_call.1} parent=1 // pred_check_branch
      %10 = sbr.rel (0) target = $region5
    $region4: #{tpu_custom_call.1} parent=1 // pred_region
      %s11 = sadd.s32 0, 0
      %p12 = scmp.lt.s32.totalorder %s11, 0
      %s13 = scalar_select %p12, %s11, 0
      %s15 = ssub.s32 16, 16
      %16 = vsyncadd [#allocation4], %s15
      %s17 = smul.addr %s13, 16
      %s18 = scalar_lea.hbm %s0, %s17
      %s20 = sshll.u32 [#allocation3], 4
      %s21 = int_to_ptr.vmem [resolvable:$true] %s20
      %23 = dma.hbm_to_vmem [thread:$0]  %s18, 16, %s21, [#allocation4]
    $region5: #{tpu_custom_call.1} parent=1 // pred_fallthru
      _
    // Predicated region
    $region6: #{tpu_custom_call.1} parent=1 // pred_check
      _
    $region7: #{tpu_custom_call.1} parent=1 // pred_check_branch
      %25 = sbr.rel (0) target = $region9
    $region8: #{tpu_custom_call.1} parent=1 // pred_region
      %s26 = sadd.s32 0, 0
      %p27 = scmp.lt.s32.totalorder %s26, 0
      %s28 = scalar_select %p27, %s26, 0
      %p29 = scmp.lt.s32.totalorder %s28, 0
      %s30 = scalar_select %p29, %s28, 0
      %s31 = scalar_lea.vmem %s1, %s30
      %s32 = sadd.s32 0, 0
      %p33 = scmp.lt.s32.totalorder %s32, 0
      %s34 = scalar_select %p33, %s32, 0
    $region9: #{tpu_custom_call.1} parent=1 // pred_fallthru
      _
    // Predicated region
    $region10: #{tpu_custom_call.1} parent=1 // pred_check
      _
    $region11: #{tpu_custom_call.1} parent=1 // pred_check_branch
      %36 = sbr.rel (0) target = $region13
    $region12: #{tpu_custom_call.1} parent=1 // pred_region
      %37 = dma.done [#allocation4], 16
    $region13: #{tpu_custom_call.1} parent=1 // pred_fallthru
      _
    %s38 = sadd.s32 0, 0
    %p39 = scmp.lt.s32.totalorder %s38, 0
    %s40 = scalar_select %p39, %s38, 0
    %p41 = scmp.lt.s32.totalorder %s40, 0
    %s42 = scalar_select %p41, %s40, 0
    %s43 = scalar_lea.vmem %s1, %s42
    %s44 = sadd.s32 0, 0
    %p45 = scmp.lt.s32.totalorder %s44, 0
    %s46 = scalar_select %p45, %s44, 0
    %s47 = sadd.s32 0, 0
    %p48 = scmp.lt.s32.totalorder %s47, 0
    %s49 = scalar_select %p48, %s47, 0
    %p50 = scmp.lt.s32.totalorder %s49, 0
    %s51 = scalar_select %p50, %s49, 0
    %s52 = scalar_lea.vmem %s1, %s51
    %s53 = sadd.s32 0, 0
    %p54 = scmp.lt.s32.totalorder %s53, 0
    %s55 = scalar_select %p54, %s53, 0
    %p56 = scmp.eq.s32.totalorder 0, 0
    // Predicated region
    $region14: #{tpu_custom_call.1} parent=1 // pred_check
      %p57 = pneg %p56
    $region15: #{tpu_custom_call.1} parent=1 // pred_check_branch
      %59 = sbr.rel (%p57) target = $region17
    $region16: #{tpu_custom_call.1} parent=1 // pred_region
      %60 = vst [vmem:[#allocation2] sm:$0x1] 0.0
    $region17: #{tpu_custom_call.1} parent=1 // pred_fallthru
      _
    %v61 = vld [vmem:[#allocation3] sm:$0x1]
    %v62 = vld [vmem:[%s52] sm:$0x1]
    %v63 = vsub.f32 %v61, %v62
    %v64 = vsub.f32 1.0, %v63
    %v65 = vmax.f32 %v64, 0.0
    %s66 = sadd.s32 0, 0
    %s67 = sadd.s32 %s66, 1
    %p68 = scmp.le.s32.totalorder %s67, 1
    // Predicated region
    $region18: #{tpu_custom_call.1} parent=1 // pred_check
      %p69 = pneg %p68
    $region19: #{tpu_custom_call.1} parent=1 // pred_check_branch
      %71 = sbr.rel (%p69) target = $region21
    $region20: #{tpu_custom_call.1} parent=1 // pred_region
      %v72 = vld [vmem:[#allocation2] sm:$0x1]
      %v73 = vadd.f32 %v72, %v65
      %74 = vst [vmem:[#allocation2] sm:$0x1] %v73
    $region21: #{tpu_custom_call.1} parent=1 // pred_fallthru
      _
    %p75 = scmp.gt.s32.totalorder %s67, 1
    // Predicated region
    $region22: #{tpu_custom_call.1} parent=1 // pred_check
      %p76 = pneg %p75
    $region23: #{tpu_custom_call.1} parent=1 // pred_check_branch
      %78 = sbr.rel (%p76) target = $region25
    $region24: #{tpu_custom_call.1} parent=1 // pred_region
      %v79 = vlaneseq
      %v80 = vshrl.u32 %v79, 7
      %v81 = vstv %s66
      %v82 = vadd.s32 %v80, %v81
      %v83 = vld [vmem:[#allocation2] sm:$0x1]
      %vm84 = vcmp.lt.s32.totalorder %v82, 1
      %v85 = vsel %vm84, %v65, 0.0
      %v86 = vadd.f32 %v83, %v85
      %87 = vst [vmem:[#allocation2] sm:$0x1] %v86
    $region25: #{tpu_custom_call.1} parent=1 // pred_fallthru
      _
    // Predicated region
    $region26: #{tpu_custom_call.1} parent=1 // pred_check
      %p88 = pneg %p56
    $region27: #{tpu_custom_call.1} parent=1 // pred_check_branch
      %90 = sbr.rel (%p88) target = $region29
    $region28: #{tpu_custom_call.1} parent=1 // pred_region
      %v91 = vld [vmem:[#allocation2] sm:$0x1]
      %v92 = vadd.f32 %v91, 0.0
      %v93 = vlaneseq
      %v94 = vshrl.u32 %v93, 7
      %vm95 = vcmp.eq.s32.totalorder %v94, 0
      %v97 = vlaneseq
      %v98 = vshrl.u32 %v97, 7
      %v99 = vsub.s32 0, %v98
      %v100 = vrot.slane %v92, %v99
      %v102 = vsel %vm95, %v100, 0.0
      %103 = vst [vmem:[#allocation6] sm:$0xff] %v102
    $region29: #{tpu_custom_call.1} parent=1 // pred_fallthru
      _
    // Predicated region
    $region30: #{tpu_custom_call.1} parent=1 // pred_check
      _
    $region31: #{tpu_custom_call.1} parent=1 // pred_check_branch
      %105 = sbr.rel (0) target = $region33
    $region32: #{tpu_custom_call.1} parent=1 // pred_region
      %s107 = ssub.s32 128, 128
      %108 = vsyncadd [#allocation5], %s107
      %s110 = sshll.u32 [#allocation6], 4
      %s111 = int_to_ptr.vmem [resolvable:$true] %s110
      %113 = dma.vmem_to_hbm [thread:$0]  %s111, 128, %s2, [#allocation5]
    $region33: #{tpu_custom_call.1} parent=1 // pred_fallthru
      _
    // Predicated region
    $region34: #{tpu_custom_call.1} parent=1 // pred_check
      _
    $region35: #{tpu_custom_call.1} parent=1 // pred_check_branch
      %115 = sbr.rel (0) target = $region37
    $region36: #{tpu_custom_call.1} parent=1 // pred_region
      %116 = dma.done [#allocation5], 128
    $region37: #{tpu_custom_call.1} parent=1 // pred_fallthru
      _
    %117 = vsyncpa [#allocation4], 1
    %118 = vsyncpa [#allocation5], 1

</llo_original>
